<compile_context>
chip_gen: v7x
topology: tpu7x:2x2x1
jax: 0.10.0
libtpu: 0.0.40
codegen_flags: <defaults>
</compile_context>

<pallas_src>
import functools

import jax
import jax.numpy as jnp
from jax.experimental import pallas as pl
from jax.experimental.pallas import tpu as pltpu


def _round_up(x, m):
    return ((x + m - 1) // m) * m


def _cdiv(a, b):
    return -(-a // b)


def _apply_act(y, activation):
    """Activation in f32 (EUP handles tanh/sigmoid; relu is VPU)."""
    if activation == "tanh":
        return jnp.tanh(y)
    if activation == "relu":
        return jnp.maximum(y, 0.0)
    if activation == "sigmoid":
        return jax.nn.sigmoid(y)
    raise ValueError(f"unknown activation {activation!r}")


def _ffn_fused_kernel(x_ref, w0_ref, b0_ref, *rest, activation, n_rest):
    """Fused multi-layer MLP on one batch tile.

    x_ref : (tile_b, Din_p)  bf16
    w0_ref: (Din_p, Dout_p)  bf16
    b0_ref: (1, Dout_p)      f32
    If n_rest > 0:
      wr_ref: (n_rest, Dout_p, Dout_p) bf16   (stacked later-layer weights)
      br_ref: (n_rest, 1, Dout_p)      f32
    o_ref : (tile_b, Dout_p) f32
    """
    if n_rest > 0:
        wr_ref, br_ref, o_ref = rest
    else:
        (o_ref,) = rest

    # Layer 0: bf16 x bf16 -> f32 accumulate on the MXU.
    h = jnp.dot(x_ref[...], w0_ref[...], preferred_element_type=jnp.float32)
    h = _apply_act(h + b0_ref[...], activation)

    # Layers 1..n_rest, statically unrolled. Dropout (eval / p=0) is identity.
    for i in range(n_rest):
        h = jnp.dot(h.astype(wr_ref.dtype), wr_ref[i],
                    preferred_element_type=jnp.float32)
        h = _apply_act(h + br_ref[i], activation)

    o_ref[...] = h.astype(o_ref.dtype)


@functools.partial(
    jax.jit,
    static_argnames=("activation", "n_rest", "batch", "in_dim", "out_dim",
                     "tile_b"))
def _ffn_forward(x, w0_p, b0_p, wr_p, br_p, *, activation, n_rest, batch,
                 in_dim, out_dim, tile_b):
    din_p, dout_p = w0_p.shape
    b_p = _round_up(batch, tile_b)

    # Zero-pad input rows/lanes and cast matmul operand to bf16.
    x_p = (jnp.zeros((b_p, din_p), jnp.bfloat16)
           .at[:batch, :in_dim].set(x.astype(jnp.bfloat16)))

    kernel = functools.partial(_ffn_fused_kernel,
                               activation=activation, n_rest=n_rest)

    in_specs = [
        pl.BlockSpec((tile_b, din_p), lambda i: (i, 0)),
        pl.BlockSpec((din_p, dout_p), lambda i: (0, 0)),
        pl.BlockSpec((1, dout_p), lambda i: (0, 0)),
    ]
    args = [x_p, w0_p, b0_p]
    if n_rest > 0:
        in_specs += [
            pl.BlockSpec((n_rest, dout_p, dout_p), lambda i: (0, 0, 0)),
            pl.BlockSpec((n_rest, 1, dout_p), lambda i: (0, 0, 0)),
        ]
        args += [wr_p, br_p]

    flops = 2 * b_p * (din_p * dout_p + n_rest * dout_p * dout_p)
    transcendentals = (b_p * dout_p * (n_rest + 1)
                       if activation in ("tanh", "sigmoid") else 0)
    bytes_accessed = (x_p.size * 2 + w0_p.size * 2 + b0_p.size * 4
                      + (wr_p.size * 2 + br_p.size * 4 if n_rest > 0 else 0)
                      + b_p * dout_p * 4)

    out_p = pl.pallas_call(
        kernel,
        out_shape=jax.ShapeDtypeStruct((b_p, dout_p), jnp.float32),
        grid_spec=pltpu.PrefetchScalarGridSpec(
            num_scalar_prefetch=0,
            grid=(b_p // tile_b,),
            in_specs=in_specs,
            out_specs=pl.BlockSpec((tile_b, dout_p), lambda i: (i, 0)),
        ),
        compiler_params=pltpu.CompilerParams(
            dimension_semantics=("parallel",)),
        cost_estimate=pl.CostEstimate(
            flops=flops,
            transcendentals=transcendentals,
            bytes_accessed=bytes_accessed),
    )(*args)

    # Slice padded rows / lanes back off.
    return out_p[:batch, :out_dim]


class FeedForwardPallas:
    """JAX/Pallas equivalent of the PyTorch FeedForward module (inference)."""

    def __init__(self, input_dim, output_dim, layers, activation="tanh",
                 dropout=0.0, key=None):
        assert layers >= 1
        if activation not in ("tanh", "relu", "sigmoid"):
            raise ValueError(f"unknown activation {activation!r}")
        self.input_dim = input_dim
        self.output_dim = output_dim
        self.layers = layers
        self.activation = activation
        self.dropout = dropout  # identity at inference
        self.n_rest = layers - 1

        # Lane-dense padded feature dims.
        self.din_p = _round_up(max(input_dim, 1), 128)
        self.dout_p = _round_up(max(output_dim, 1), 128)

        if key is None:
            key = jax.random.PRNGKey(0)

        # Deterministic init, PyTorch-Linear-like U(-1/sqrt(fan_in), 1/sqrt(fan_in)).
        # Stored as (in, out), i.e. transposed vs. nn.Linear's (out, in).
        self.params = []
        in_dim = input_dim
        for _ in range(layers):
            key, wk, bk = jax.random.split(key, 3)
            bound = 1.0 / float(in_dim) ** 0.5
            w = jax.random.uniform(wk, (in_dim, output_dim), jnp.float32,
                                   minval=-bound, maxval=bound)
            b = jax.random.uniform(bk, (output_dim,), jnp.float32,
                                   minval=-bound, maxval=bound)
            self.params.append((w, b))
            in_dim = output_dim

        # Padded, dtype-converted parameters for the fused kernel.
        w0, b0 = self.params[0]
        self.w0_p = (jnp.zeros((self.din_p, self.dout_p), jnp.bfloat16)
                     .at[:input_dim, :output_dim].set(w0.astype(jnp.bfloat16)))
        self.b0_p = (jnp.zeros((1, self.dout_p), jnp.float32)
                     .at[0, :output_dim].set(b0))

        if self.n_rest > 0:
            wr = jnp.zeros((self.n_rest, self.dout_p, self.dout_p),
                           jnp.bfloat16)
            br = jnp.zeros((self.n_rest, 1, self.dout_p), jnp.float32)
            for i in range(self.n_rest):
                w, b = self.params[i + 1]
                wr = wr.at[i, :output_dim, :output_dim].set(
                    w.astype(jnp.bfloat16))
                br = br.at[i, 0, :output_dim].set(b)
            self.wr_p = wr
            self.br_p = br
        else:
            self.wr_p = None
            self.br_p = None

    def _choose_tile_b(self, B):
        """Batch tile: ~512 rows, minimal padding waste, fits scoped VMEM."""
        n_tiles = max(1, _cdiv(B, 512))
        tile_b = _round_up(_cdiv(B, n_tiles), 8)

        def vmem_bytes(tb):
            io = 2 * tb * self.din_p * 2 + 2 * tb * self.dout_p * 4  # dbl-buf
            act = 2 * tb * self.dout_p * 4                           # f32 h
            w = (self.din_p * self.dout_p * 2 + self.dout_p * 4
                 + self.n_rest * (self.dout_p * self.dout_p * 2
                                  + self.dout_p * 4))
            return io + act + w

        while tile_b > 8 and vmem_bytes(tile_b) > 24 * 1024 * 1024:
            tile_b = _round_up(tile_b // 2, 8)
        return tile_b

    def __call__(self, x):
        B, din = x.shape
        assert din == self.input_dim
        tile_b = self._choose_tile_b(B)
        return _ffn_forward(
            x, self.w0_p, self.b0_p, self.wr_p, self.br_p,
            activation=self.activation, n_rest=self.n_rest,
            batch=B, in_dim=self.input_dim, out_dim=self.output_dim,
            tile_b=tile_b)


if __name__ == "__main__":
    key = jax.random.PRNGKey(0)
    key, xk = jax.random.split(key)

    batch, input_dim, output_dim, layers = 8, 16, 32, 3
    x = jax.random.normal(xk, (batch, input_dim), jnp.float32)

    model = FeedForwardPallas(input_dim, output_dim, layers,
                              activation="tanh", dropout=0.0, key=key)
    out = jax.block_until_ready(model(x))
    assert out.shape == (batch, output_dim)

    # Also exercise the single-layer (no stacked-weights) path.
    model1 = FeedForwardPallas(input_dim, output_dim, 1,
                               activation="relu", dropout=0.0, key=key)
    out1 = jax.block_until_ready(model1(x))
    assert out1.shape == (batch, output_dim)
    ref1 = jnp.maximum(
        jnp.dot(x.astype(jnp.bfloat16),
                model1.params[0][0].astype(jnp.bfloat16),
                preferred_element_type=jnp.float32) + model1.params[0][1], 0.0)
    assert jnp.allclose(out1, ref1, atol=2e-3, rtol=2e-3)

    # Reference 1: mimic the kernel's bf16-operand / f32-accumulate math.
    ref_bf16 = x
    for (w, b) in model.params:
        ref_bf16 = jnp.tanh(
            jnp.dot(ref_bf16.astype(jnp.bfloat16), w.astype(jnp.bfloat16),
                    preferred_element_type=jnp.float32) + b)
    assert jnp.allclose(out, ref_bf16, atol=2e-3, rtol=2e-3)

    # Reference 2: pure f32 math (looser tolerance due to bf16 matmul operands).
    ref_f32 = x
    for (w, b) in model.params:
        ref_f32 = jnp.tanh(ref_f32 @ w + b)
    assert jnp.allclose(out, ref_f32, atol=3e-2, rtol=3e-2)

    print("KERNEL_OK")
</pallas_src>

<mosaic_0001>
module attributes {stable_mosaic.version = 11 : i64} {
  func.func @_ffn_fused_kernel(%arg0: i32, %arg1: memref<8x128xbf16, #tpu.memory_space<vmem>>, %arg2: memref<128x128xbf16, #tpu.memory_space<vmem>>, %arg3: memref<1x128xf32, #tpu.memory_space<vmem>>, %arg4: memref<2x128x128xbf16, #tpu.memory_space<vmem>>, %arg5: memref<2x1x128xf32, #tpu.memory_space<vmem>>, %arg6: memref<8x128xf32, #tpu.memory_space<vmem>>) attributes {dimension_semantics = [#tpu.dimension_semantics<parallel>], iteration_bounds = array<i64: 1>, scalar_prefetch = 0 : i64, scratch_operands = 0 : i64, tpu.core_type = #tpu.core_type<tc>, window_params = [{transform_indices = @transform_0, window_bounds = array<i64: 8, 128>}, {pipeline_mode = #tpu.pipeline_mode<synchronous>, transform_indices = @transform_1, window_bounds = array<i64: 128, 128>}, {pipeline_mode = #tpu.pipeline_mode<synchronous>, transform_indices = @transform_2, window_bounds = array<i64: 1, 128>}, {pipeline_mode = #tpu.pipeline_mode<synchronous>, transform_indices = @transform_3, window_bounds = array<i64: 2, 128, 128>}, {pipeline_mode = #tpu.pipeline_mode<synchronous>, transform_indices = @transform_4, window_bounds = array<i64: 2, 1, 128>}, {transform_indices = @transform_5, window_bounds = array<i64: 8, 128>}]} {
    %c0 = arith.constant 0 : index
    %c0_0 = arith.constant 0 : index
    %0 = vector.load %arg1[%c0, %c0_0] : memref<8x128xbf16, #tpu.memory_space<vmem>>, vector<8x128xbf16>
    %c0_1 = arith.constant 0 : index
    %c0_2 = arith.constant 0 : index
    %1 = vector.load %arg2[%c0_1, %c0_2] : memref<128x128xbf16, #tpu.memory_space<vmem>>, vector<128x128xbf16>
    %cst = arith.constant dense<0.000000e+00> : vector<8x128xf32>
    %2 = tpu.matmul %0, %1, %cst {dimension_numbers = #tpu.dot_dimension_numbers<[1], [0], [0], [1], [0, 0, 1, 1], [], []>} : vector<8x128xbf16>, vector<128x128xbf16>, vector<8x128xf32> -> vector<8x128xf32>
    %c0_3 = arith.constant 0 : index
    %c0_4 = arith.constant 0 : index
    %3 = vector.load %arg3[%c0_3, %c0_4] : memref<1x128xf32, #tpu.memory_space<vmem>>, vector<1x128xf32>
    %4 = vector.broadcast %3 : vector<1x128xf32> to vector<8x128xf32>
    %5 = arith.addf %2, %4 : vector<8x128xf32>
    %6 = math.tanh %5 : vector<8x128xf32>
    %7 = arith.truncf %6 : vector<8x128xf32> to vector<8x128xbf16>
    %c0_5 = arith.constant 0 : index
    %c0_6 = arith.constant 0 : index
    %c0_7 = arith.constant 0 : index
    %8 = vector.load %arg4[%c0_5, %c0_6, %c0_7] : memref<2x128x128xbf16, #tpu.memory_space<vmem>>, vector<1x128x128xbf16>
    %9 = vector.shape_cast %8 : vector<1x128x128xbf16> to vector<128x128xbf16>
    %cst_8 = arith.constant dense<0.000000e+00> : vector<8x128xf32>
    %10 = tpu.matmul %7, %9, %cst_8 {dimension_numbers = #tpu.dot_dimension_numbers<[1], [0], [0], [1], [0, 0, 1, 1], [], []>} : vector<8x128xbf16>, vector<128x128xbf16>, vector<8x128xf32> -> vector<8x128xf32>
    %c0_9 = arith.constant 0 : index
    %c0_10 = arith.constant 0 : index
    %c0_11 = arith.constant 0 : index
    %11 = vector.load %arg5[%c0_9, %c0_10, %c0_11] : memref<2x1x128xf32, #tpu.memory_space<vmem>>, vector<1x1x128xf32>
    %12 = vector.shape_cast %11 : vector<1x1x128xf32> to vector<1x128xf32>
    %13 = vector.broadcast %12 : vector<1x128xf32> to vector<8x128xf32>
    %14 = arith.addf %10, %13 : vector<8x128xf32>
    %15 = math.tanh %14 : vector<8x128xf32>
    %16 = arith.truncf %15 : vector<8x128xf32> to vector<8x128xbf16>
    %c1 = arith.constant 1 : index
    %c0_12 = arith.constant 0 : index
    %c0_13 = arith.constant 0 : index
    %17 = vector.load %arg4[%c1, %c0_12, %c0_13] : memref<2x128x128xbf16, #tpu.memory_space<vmem>>, vector<1x128x128xbf16>
    %18 = vector.shape_cast %17 : vector<1x128x128xbf16> to vector<128x128xbf16>
    %cst_14 = arith.constant dense<0.000000e+00> : vector<8x128xf32>
    %19 = tpu.matmul %16, %18, %cst_14 {dimension_numbers = #tpu.dot_dimension_numbers<[1], [0], [0], [1], [0, 0, 1, 1], [], []>} : vector<8x128xbf16>, vector<128x128xbf16>, vector<8x128xf32> -> vector<8x128xf32>
    %c1_15 = arith.constant 1 : index
    %c0_16 = arith.constant 0 : index
    %c0_17 = arith.constant 0 : index
    %20 = vector.load %arg5[%c1_15, %c0_16, %c0_17] : memref<2x1x128xf32, #tpu.memory_space<vmem>>, vector<1x1x128xf32>
    %21 = vector.shape_cast %20 : vector<1x1x128xf32> to vector<1x128xf32>
    %22 = vector.broadcast %21 : vector<1x128xf32> to vector<8x128xf32>
    %23 = arith.addf %19, %22 : vector<8x128xf32>
    %24 = math.tanh %23 : vector<8x128xf32>
    %c0_18 = arith.constant 0 : index
    %c0_19 = arith.constant 0 : index
    %25 = vector.load %arg6[%c0_18, %c0_19] : memref<8x128xf32, #tpu.memory_space<vmem>>, vector<8x128xf32>
    tpu.vector_store %arg6[%c0_18, %c0_19], %24 {strides = array<i32>} : memref<8x128xf32, #tpu.memory_space<vmem>>, vector<8x128xf32>,
    return
  }
  func.func @transform_0(%arg0: i32) -> (i32, i32) {
    %c0_i32 = arith.constant 0 : i32
    %c0_i32_0 = arith.constant 0 : i32
    return %arg0, %c0_i32 : i32, i32
  }
  func.func @transform_1(%arg0: i32) -> (i32, i32) {
    %c0_i32 = arith.constant 0 : i32
    %c0_i32_0 = arith.constant 0 : i32
    %c0_i32_1 = arith.constant 0 : i32
    return %c0_i32, %c0_i32_0 : i32, i32
  }
  func.func @transform_2(%arg0: i32) -> (i32, i32) {
    %c0_i32 = arith.constant 0 : i32
    %c0_i32_0 = arith.constant 0 : i32
    %c0_i32_1 = arith.constant 0 : i32
    return %c0_i32, %c0_i32_0 : i32, i32
  }
  func.func @transform_3(%arg0: i32) -> (i32, i32, i32) {
    %c0_i32 = arith.constant 0 : i32
    %c0_i32_0 = arith.constant 0 : i32
    %c0_i32_1 = arith.constant 0 : i32
    %c0_i32_2 = arith.constant 0 : i32
    return %c0_i32, %c0_i32_0, %c0_i32_1 : i32, i32, i32
  }
  func.func @transform_4(%arg0: i32) -> (i32, i32, i32) {
    %c0_i32 = arith.constant 0 : i32
    %c0_i32_0 = arith.constant 0 : i32
    %c0_i32_1 = arith.constant 0 : i32
    %c0_i32_2 = arith.constant 0 : i32
    return %c0_i32, %c0_i32_0, %c0_i32_1 : i32, i32, i32
  }
  func.func @transform_5(%arg0: i32) -> (i32, i32) {
    %c0_i32 = arith.constant 0 : i32
    %c0_i32_0 = arith.constant 0 : i32
    return %arg0, %c0_i32 : i32, i32
  }
}

</mosaic_0001>

<llo_original>
// kernel: _ffn_forward.1
$region0: #{_ffn_forward.1}
  #allocation0 [shape = 'u32[]', space=smem, size = 0x4, offset = 0x4, fixed_abs, tag = 'smem constant byte address 0x4 - core index']
  #allocation1 [shape = 'u32[144,128]{1,0:T(1,128)}', space=vmem, size = 0x12000, scoped, tag = 'internal scratch']
  %s0 = inlined_call_operand.vmem [shape: bf16[8,128], index: 0, kind: input, shape index: {}]
  %s1 = inlined_call_operand.hbm [shape: bf16[128,128], index: 1, kind: input, shape index: {}]
  %s2 = inlined_call_operand.vmem [shape: f32[1,128], index: 2, kind: input, shape index: {}]
  %s3 = inlined_call_operand.hbm [shape: bf16[2,128,128], index: 3, kind: input, shape index: {}]
  %s4 = inlined_call_operand.vmem [shape: f32[2,1,128], index: 4, kind: input, shape index: {}]
  %s5 = inlined_call_operand.hbm [shape: f32[8,128], index: 5, kind: output, shape index: {}]
  %s6 = sld [smem:[#allocation0]]
  $region38: #{_ffn_forward.1} parent=0
    _
  %s8 = ssub.s32 1, %s6
  %s9 = scalar_select 0, %s8, %s6
  $region1: #{_ffn_forward.1} parent=0
    #allocation2 [shape = 'u8[32768]{0}', space=vmem, size = 0x8000, scoped, tag = 'input window, operand 1, single buffered']
    #allocation3 [shape = 's32[1]{0}', space=sflag, size = 0x4, scoped, tag = 'scoped memory for _ffn_forward.1']
    #allocation4 [shape = 's32[1]{0}', space=sflag, size = 0x4, scoped, tag = 'scoped memory for _ffn_forward.1']
    #allocation5 [shape = 'u8[65536]{0}', space=vmem, size = 0x10000, scoped, tag = 'input window, operand 3, single buffered']
    #allocation6 [shape = 's32[1]{0}', space=sflag, size = 0x4, scoped, tag = 'scoped memory for _ffn_forward.1']
    #allocation7 [shape = 'u8[4096]{0}', space=vmem, size = 0x1000, scoped, tag = 'output window, operand 0, single buffered']
    %10 = vsyncpa [#allocation3], 0
    %11 = vsyncpa [#allocation6], 0
    %12 = vsyncpa [#allocation4], 0
    // Predicated region
    $region2: #{_ffn_forward.1} parent=1 // pred_check
      _
    $region3: #{_ffn_forward.1} parent=1 // pred_check_branch
      %14 = sbr.rel (0) target = $region5
    $region4: #{_ffn_forward.1} parent=1 // pred_region
      _
    $region5: #{_ffn_forward.1} parent=1 // pred_fallthru
      _
    // Predicated region
    $region6: #{_ffn_forward.1} parent=1 // pred_check
      _
    $region7: #{_ffn_forward.1} parent=1 // pred_check_branch
      %16 = sbr.rel (0) target = $region9
    $region8: #{_ffn_forward.1} parent=1 // pred_region
      %s18 = ssub.s32 1024, 1024
      %19 = vsyncadd [#allocation3], %s18
      %s20 = sshll.u32 [#allocation2], 4
      %s21 = int_to_ptr.vmem [resolvable:$true] %s20
      %26 = dma.hbm_to_vmem [thread:$0]  %s1, 1024, %s21, [#allocation3], 64, 64, 4
    $region9: #{_ffn_forward.1} parent=1 // pred_fallthru
      _
    // Predicated region
    $region10: #{_ffn_forward.1} parent=1 // pred_check
      _
    $region11: #{_ffn_forward.1} parent=1 // pred_check_branch
      %28 = sbr.rel (0) target = $region13
    $region12: #{_ffn_forward.1} parent=1 // pred_region
      _
    $region13: #{_ffn_forward.1} parent=1 // pred_fallthru
      _
    // Predicated region
    $region14: #{_ffn_forward.1} parent=1 // pred_check
      _
    $region15: #{_ffn_forward.1} parent=1 // pred_check_branch
      %30 = sbr.rel (0) target = $region17
    $region16: #{_ffn_forward.1} parent=1 // pred_region
      %s32 = ssub.s32 2048, 2048
      %33 = vsyncadd [#allocation6], %s32
      %s34 = sshll.u32 [#allocation5], 4
      %s35 = int_to_ptr.vmem [resolvable:$true] %s34
      %40 = dma.hbm_to_vmem [thread:$0]  %s3, 2048, %s35, [#allocation6], 64, 64, 4
    $region17: #{_ffn_forward.1} parent=1 // pred_fallthru
      _
    // Predicated region
    $region18: #{_ffn_forward.1} parent=1 // pred_check
      _
    $region19: #{_ffn_forward.1} parent=1 // pred_check_branch
      %42 = sbr.rel (0) target = $region21
    $region20: #{_ffn_forward.1} parent=1 // pred_region
      _
    $region21: #{_ffn_forward.1} parent=1 // pred_fallthru
      _
    // Predicated region
    $region22: #{_ffn_forward.1} parent=1 // pred_check
      _
    $region23: #{_ffn_forward.1} parent=1 // pred_check_branch
      %44 = sbr.rel (0) target = $region25
    $region24: #{_ffn_forward.1} parent=1 // pred_region
      %45 = dma.done [#allocation3], 1024
    $region25: #{_ffn_forward.1} parent=1 // pred_fallthru
      _
    // Predicated region
    $region26: #{_ffn_forward.1} parent=1 // pred_check
      _
    $region27: #{_ffn_forward.1} parent=1 // pred_check_branch
      %47 = sbr.rel (0) target = $region29
    $region28: #{_ffn_forward.1} parent=1 // pred_region
      %48 = dma.done [#allocation6], 2048
    $region29: #{_ffn_forward.1} parent=1 // pred_fallthru
      _
    %v50 = vld [vmem:[%s0] sm:$0xf]
    %v51 = vld [vmem:[#allocation2] sm:$0xf]
    %v52 = vld [vmem:[#allocation2 + $0x4] sm:$0xf]
    %v53 = vld [vmem:[#allocation2 + $0x8] sm:$0xf]
    %v54 = vld [vmem:[#allocation2 + $0xc] sm:$0xf]
    %v55 = vld [vmem:[#allocation2 + $0x10] sm:$0xf]
    %v56 = vld [vmem:[#allocation2 + $0x14] sm:$0xf]
    %v57 = vld [vmem:[#allocation2 + $0x18] sm:$0xf]
    %v58 = vld [vmem:[#allocation2 + $0x1c] sm:$0xf]
    %v59 = vld [vmem:[#allocation2 + $0x20] sm:$0xf]
    %v60 = vld [vmem:[#allocation2 + $0x24] sm:$0xf]
    %v61 = vld [vmem:[#allocation2 + $0x28] sm:$0xf]
    %v62 = vld [vmem:[#allocation2 + $0x2c] sm:$0xf]
    %v63 = vld [vmem:[#allocation2 + $0x30] sm:$0xf]
    %v64 = vld [vmem:[#allocation2 + $0x34] sm:$0xf]
    %v65 = vld [vmem:[#allocation2 + $0x38] sm:$0xf]
    %v66 = vld [vmem:[#allocation2 + $0x3c] sm:$0xf]
    %v67 = vld [vmem:[%s2] sm:$0x1]
    %v69 = vlaneseq
    %v70 = vshrl.u32 %v69, 7
    %v71 = vsub.s32 0, %v70
    %v72 = vrot.slane %v67, %v71
    %v90 = vunpack.c.l.b16 %v51
    %v91 = vunpack.c.l.b16 %v52
    %v92 = vunpack.c.l.b16 %v53
    %v93 = vunpack.c.l.b16 %v54
    %v94 = vunpack.c.l.b16 %v55
    %v95 = vunpack.c.l.b16 %v56
    %v96 = vunpack.c.l.b16 %v57
    %v97 = vunpack.c.l.b16 %v58
    %v98 = vunpack.c.l.b16 %v59
    %v99 = vunpack.c.l.b16 %v60
    %v100 = vunpack.c.l.b16 %v61
    %v101 = vunpack.c.l.b16 %v62
    %v102 = vunpack.c.l.b16 %v63
    %v103 = vunpack.c.l.b16 %v64
    %v104 = vunpack.c.l.b16 %v65
    %v105 = vunpack.c.l.b16 %v66
    %v106 = vpack.c.b16 %v91, %v90
    %v107 = vpack.c.b16 %v93, %v92
    %v108 = vpack.c.b16 %v95, %v94
    %v109 = vpack.c.b16 %v97, %v96
    %v110 = vpack.c.b16 %v99, %v98
    %v111 = vpack.c.b16 %v101, %v100
    %v112 = vpack.c.b16 %v103, %v102
    %v113 = vpack.c.b16 %v105, %v104
    %122 = vmatprep.subr.bf16.mxu0 0
    %123 = vmatpush1.bf16.msra.mxu0 %v106
    %124 = vmatprep.subr.bf16.mxu0 0
    %125 = vmatpush1.bf16.msra.mxu0 %v107
    %126 = vmatprep.subr.bf16.mxu0 0
    %127 = vmatpush1.bf16.msra.mxu0 %v108
    %128 = vmatprep.subr.bf16.mxu0 0
    %129 = vmatpush1.bf16.msra.mxu0 %v109
    %130 = vmatprep.subr.bf16.mxu0 0
    %131 = vmatpush1.bf16.msra.mxu0 %v110
    %132 = vmatprep.subr.bf16.mxu0 0
    %133 = vmatpush1.bf16.msra.mxu0 %v111
    %134 = vmatprep.subr.bf16.mxu0 0
    %135 = vmatpush1.bf16.msra.mxu0 %v112
    %136 = vmatprep.subr.bf16.mxu0 0
    %137 = vmatpush1.bf16.msra.mxu0 %v113
    %138 = vmatprep.subr.bf16.mxu0 0
    %139 = vmatpush1.bf16.msra.mxu0 0
    %140 = vmatprep.subr.bf16.mxu0 0
    %141 = vmatpush1.bf16.msra.mxu0 0
    %142 = vmatprep.subr.bf16.mxu0 0
    %143 = vmatpush1.bf16.msra.mxu0 0
    %144 = vmatprep.subr.bf16.mxu0 0
    %145 = vmatpush1.bf16.msra.mxu0 0
    %146 = vmatprep.subr.bf16.mxu0 0
    %147 = vmatpush1.bf16.msra.mxu0 0
    %148 = vmatprep.subr.bf16.mxu0 0
    %149 = vmatpush1.bf16.msra.mxu0 0
    %150 = vmatprep.subr.bf16.mxu0 0
    %151 = vmatpush1.bf16.msra.mxu0 0
    %152 = vmatprep.subr.bf16.mxu0 0
    %153 = vmatpush1.bf16.msra.mxu0 0
    %154 = vmatprep.mubr.bf16.mxu0 0
    %155 = vmatmul.mubr.bf16.gmra.mrb[0].mxu0 %v50
    %v156 = vpop.f32.mrb[0].mxu0
    %v157 = vadd.f32 %v72, %v156
    %v158 = vpop.f32.mrb[0].mxu0
    %v159 = vpop.f32.mrb[0].mxu0
    %v160 = vpop.f32.mrb[0].mxu0
    %161 = vdwg.mxu0
    %v162 = vtanh.pop %v157
    %v163 = vpack.c.bf16 %v162, %v162
    %v164 = vld [vmem:[#allocation5] sm:$0xf]
    %v165 = vld [vmem:[#allocation5 + $0x4] sm:$0xf]
    %v166 = vld [vmem:[#allocation5 + $0x8] sm:$0xf]
    %v167 = vld [vmem:[#allocation5 + $0xc] sm:$0xf]
    %v168 = vld [vmem:[#allocation5 + $0x10] sm:$0xf]
    %v169 = vld [vmem:[#allocation5 + $0x14] sm:$0xf]
    %v170 = vld [vmem:[#allocation5 + $0x18] sm:$0xf]
    %v171 = vld [vmem:[#allocation5 + $0x1c] sm:$0xf]
    %v172 = vld [vmem:[#allocation5 + $0x20] sm:$0xf]
    %v173 = vld [vmem:[#allocation5 + $0x24] sm:$0xf]
    %v174 = vld [vmem:[#allocation5 + $0x28] sm:$0xf]
    %v175 = vld [vmem:[#allocation5 + $0x2c] sm:$0xf]
    %v176 = vld [vmem:[#allocation5 + $0x30] sm:$0xf]
    %v177 = vld [vmem:[#allocation5 + $0x34] sm:$0xf]
    %v178 = vld [vmem:[#allocation5 + $0x38] sm:$0xf]
    %v179 = vld [vmem:[#allocation5 + $0x3c] sm:$0xf]
    %v180 = vld [vmem:[%s4] sm:$0x1]
    %v182 = vlaneseq
    %v183 = vshrl.u32 %v182, 7
    %v184 = vsub.s32 0, %v183
    %v185 = vrot.slane %v180, %v184
    %v203 = vunpack.c.l.b16 %v164
    %v204 = vunpack.c.l.b16 %v165
    %v205 = vunpack.c.l.b16 %v166
    %v206 = vunpack.c.l.b16 %v167
    %v207 = vunpack.c.l.b16 %v168
    %v208 = vunpack.c.l.b16 %v169
    %v209 = vunpack.c.l.b16 %v170
    %v210 = vunpack.c.l.b16 %v171
    %v211 = vunpack.c.l.b16 %v172
    %v212 = vunpack.c.l.b16 %v173
    %v213 = vunpack.c.l.b16 %v174
    %v214 = vunpack.c.l.b16 %v175
    %v215 = vunpack.c.l.b16 %v176
    %v216 = vunpack.c.l.b16 %v177
    %v217 = vunpack.c.l.b16 %v178
    %v218 = vunpack.c.l.b16 %v179
    %v219 = vpack.c.b16 %v204, %v203
    %v220 = vpack.c.b16 %v206, %v205
    %v221 = vpack.c.b16 %v208, %v207
    %v222 = vpack.c.b16 %v210, %v209
    %v223 = vpack.c.b16 %v212, %v211
    %v224 = vpack.c.b16 %v214, %v213
    %v225 = vpack.c.b16 %v216, %v215
    %v226 = vpack.c.b16 %v218, %v217
    %235 = vmatprep.subr.bf16.mxu0 0
    %236 = vmatpush1.bf16.msra.mxu0 %v219
    %237 = vmatprep.subr.bf16.mxu0 0
    %238 = vmatpush1.bf16.msra.mxu0 %v220
    %239 = vmatprep.subr.bf16.mxu0 0
    %240 = vmatpush1.bf16.msra.mxu0 %v221
    %241 = vmatprep.subr.bf16.mxu0 0
    %242 = vmatpush1.bf16.msra.mxu0 %v222
    %243 = vmatprep.subr.bf16.mxu0 0
    %244 = vmatpush1.bf16.msra.mxu0 %v223
    %245 = vmatprep.subr.bf16.mxu0 0
    %246 = vmatpush1.bf16.msra.mxu0 %v224
    %247 = vmatprep.subr.bf16.mxu0 0
    %248 = vmatpush1.bf16.msra.mxu0 %v225
    %249 = vmatprep.subr.bf16.mxu0 0
    %250 = vmatpush1.bf16.msra.mxu0 %v226
    %251 = vmatprep.subr.bf16.mxu0 0
    %252 = vmatpush1.bf16.msra.mxu0 0
    %253 = vmatprep.subr.bf16.mxu0 0
    %254 = vmatpush1.bf16.msra.mxu0 0
    %255 = vmatprep.subr.bf16.mxu0 0
    %256 = vmatpush1.bf16.msra.mxu0 0
    %257 = vmatprep.subr.bf16.mxu0 0
    %258 = vmatpush1.bf16.msra.mxu0 0
    %259 = vmatprep.subr.bf16.mxu0 0
    %260 = vmatpush1.bf16.msra.mxu0 0
    %261 = vmatprep.subr.bf16.mxu0 0
    %262 = vmatpush1.bf16.msra.mxu0 0
    %263 = vmatprep.subr.bf16.mxu0 0
    %264 = vmatpush1.bf16.msra.mxu0 0
    %265 = vmatprep.subr.bf16.mxu0 0
    %266 = vmatpush1.bf16.msra.mxu0 0
    %267 = vmatprep.mubr.bf16.mxu0 0
    %268 = vmatmul.mubr.bf16.gmra.mrb[0].mxu0 %v163
    %v269 = vpop.f32.mrb[0].mxu0
    %v270 = vadd.f32 %v185, %v269
    %v271 = vpop.f32.mrb[0].mxu0
    %v272 = vpop.f32.mrb[0].mxu0
    %v273 = vpop.f32.mrb[0].mxu0
    %274 = vdwg.mxu0
    %v275 = vtanh.pop %v270
    %v276 = vpack.c.bf16 %v275, %v275
    %s277 = scalar_lea.vmem [#allocation5], 64
    %v278 = vld [vmem:[%s277] sm:$0xf]
    %v279 = vld [vmem:[%s277 + $0x4] sm:$0xf]
    %v280 = vld [vmem:[%s277 + $0x8] sm:$0xf]
    %v281 = vld [vmem:[%s277 + $0xc] sm:$0xf]
    %v282 = vld [vmem:[%s277 + $0x10] sm:$0xf]
    %v283 = vld [vmem:[%s277 + $0x14] sm:$0xf]
    %v284 = vld [vmem:[%s277 + $0x18] sm:$0xf]
    %v285 = vld [vmem:[%s277 + $0x1c] sm:$0xf]
    %v286 = vld [vmem:[%s277 + $0x20] sm:$0xf]
    %v287 = vld [vmem:[%s277 + $0x24] sm:$0xf]
    %v288 = vld [vmem:[%s277 + $0x28] sm:$0xf]
    %v289 = vld [vmem:[%s277 + $0x2c] sm:$0xf]
    %v290 = vld [vmem:[%s277 + $0x30] sm:$0xf]
    %v291 = vld [vmem:[%s277 + $0x34] sm:$0xf]
    %v292 = vld [vmem:[%s277 + $0x38] sm:$0xf]
    %v293 = vld [vmem:[%s277 + $0x3c] sm:$0xf]
    %s294 = scalar_lea.vmem %s4, 1
    %v295 = vld [vmem:[%s294] sm:$0x1]
    %v297 = vlaneseq
    %v298 = vshrl.u32 %v297, 7
    %v299 = vsub.s32 0, %v298
    %v300 = vrot.slane %v295, %v299
    %v318 = vunpack.c.l.b16 %v278
    %v319 = vunpack.c.l.b16 %v279
    %v320 = vunpack.c.l.b16 %v280
    %v321 = vunpack.c.l.b16 %v281
    %v322 = vunpack.c.l.b16 %v282
    %v323 = vunpack.c.l.b16 %v283
    %v324 = vunpack.c.l.b16 %v284
    %v325 = vunpack.c.l.b16 %v285
    %v326 = vunpack.c.l.b16 %v286
    %v327 = vunpack.c.l.b16 %v287
    %v328 = vunpack.c.l.b16 %v288
    %v329 = vunpack.c.l.b16 %v289
    %v330 = vunpack.c.l.b16 %v290
    %v331 = vunpack.c.l.b16 %v291
    %v332 = vunpack.c.l.b16 %v292
    %v333 = vunpack.c.l.b16 %v293
    %v334 = vpack.c.b16 %v319, %v318
    %v335 = vpack.c.b16 %v321, %v320
    %v336 = vpack.c.b16 %v323, %v322
    %v337 = vpack.c.b16 %v325, %v324
    %v338 = vpack.c.b16 %v327, %v326
    %v339 = vpack.c.b16 %v329, %v328
    %v340 = vpack.c.b16 %v331, %v330
    %v341 = vpack.c.b16 %v333, %v332
    %350 = vmatprep.subr.bf16.mxu0 0
    %351 = vmatpush1.bf16.msra.mxu0 %v334
    %352 = vmatprep.subr.bf16.mxu0 0
    %353 = vmatpush1.bf16.msra.mxu0 %v335
    %354 = vmatprep.subr.bf16.mxu0 0
    %355 = vmatpush1.bf16.msra.mxu0 %v336
    %356 = vmatprep.subr.bf16.mxu0 0
    %357 = vmatpush1.bf16.msra.mxu0 %v337
    %358 = vmatprep.subr.bf16.mxu0 0
    %359 = vmatpush1.bf16.msra.mxu0 %v338
    %360 = vmatprep.subr.bf16.mxu0 0
    %361 = vmatpush1.bf16.msra.mxu0 %v339
    %362 = vmatprep.subr.bf16.mxu0 0
    %363 = vmatpush1.bf16.msra.mxu0 %v340
    %364 = vmatprep.subr.bf16.mxu0 0
    %365 = vmatpush1.bf16.msra.mxu0 %v341
    %366 = vmatprep.subr.bf16.mxu0 0
    %367 = vmatpush1.bf16.msra.mxu0 0
    %368 = vmatprep.subr.bf16.mxu0 0
    %369 = vmatpush1.bf16.msra.mxu0 0
    %370 = vmatprep.subr.bf16.mxu0 0
    %371 = vmatpush1.bf16.msra.mxu0 0
    %372 = vmatprep.subr.bf16.mxu0 0
    %373 = vmatpush1.bf16.msra.mxu0 0
    %374 = vmatprep.subr.bf16.mxu0 0
    %375 = vmatpush1.bf16.msra.mxu0 0
    %376 = vmatprep.subr.bf16.mxu0 0
    %377 = vmatpush1.bf16.msra.mxu0 0
    %378 = vmatprep.subr.bf16.mxu0 0
    %379 = vmatpush1.bf16.msra.mxu0 0
    %380 = vmatprep.subr.bf16.mxu0 0
    %381 = vmatpush1.bf16.msra.mxu0 0
    %382 = vmatprep.mubr.bf16.mxu0 0
    %383 = vmatmul.mubr.bf16.gmra.mrb[0].mxu0 %v276
    %v384 = vpop.f32.mrb[0].mxu0
    %v385 = vadd.f32 %v300, %v384
    %v386 = vpop.f32.mrb[0].mxu0
    %v387 = vpop.f32.mrb[0].mxu0
    %v388 = vpop.f32.mrb[0].mxu0
    %389 = vdwg.mxu0
    %v390 = vtanh.pop %v385
    %391 = vst [vmem:[#allocation7] sm:$0xff] %v390
    // Predicated region
    $region30: #{_ffn_forward.1} parent=1 // pred_check
      _
    $region31: #{_ffn_forward.1} parent=1 // pred_check_branch
      %393 = sbr.rel (0) target = $region33
    $region32: #{_ffn_forward.1} parent=1 // pred_region
      %s395 = ssub.s32 128, 128
      %396 = vsyncadd [#allocation4], %s395
      %s398 = sshll.u32 [#allocation7], 4
      %s399 = int_to_ptr.vmem [resolvable:$true] %s398
      %401 = dma.vmem_to_hbm [thread:$0]  %s399, 128, %s5, [#allocation4]
    $region33: #{_ffn_forward.1} parent=1 // pred_fallthru
      _
    // Predicated region
    $region34: #{_ffn_forward.1} parent=1 // pred_check
      _
    $region35: #{_ffn_forward.1} parent=1 // pred_check_branch
      %403 = sbr.rel (0) target = $region37
    $region36: #{_ffn_forward.1} parent=1 // pred_region
      %404 = dma.done [#allocation4], 128
    $region37: #{_ffn_forward.1} parent=1 // pred_fallthru
      _
    %405 = vsyncpa [#allocation3], 1
    %406 = vsyncpa [#allocation6], 1
    %407 = vsyncpa [#allocation4], 1

</llo_original>
